<compile_context>
chip_gen: v7x
topology: tpu7x:2x2x1
jax: 0.10.0
libtpu: 0.0.40
codegen_flags: <defaults>
</compile_context>

<pallas_src>
import functools

import jax
import jax.numpy as jnp
from jax.experimental import pallas as pl
from jax.experimental.pallas import tpu as pltpu

LANE = 128


def _round_up(n, m):
    return (n + m - 1) // m * m


def _lognormal_fused_kernel(x_ref, w1_ref, b1_ref, w2_ref, b2_ref, eps_ref,
                            out_ref, *, out_dim, op2):
    # x: (tb, d_in) f32; w1: (d_in, hp) bf16; b1: (1, hp) f32
    # w2: (hp, op2) bf16; b2: (1, op2) f32; eps: (tb, out_dim) f32
    # out: (tb, 2*op2) f32  ==  [ mu | logvar | 0...  ||  z | 0... ]

    # fused first layer (mean||var branches) + ReLU, f32 accumulate.
    x = x_ref[...].astype(jnp.bfloat16)
    h = jnp.dot(x, w1_ref[...], preferred_element_type=jnp.float32) + b1_ref[...]
    h = jnp.maximum(h, 0.0)

    # fused second layer: block-diagonal W2 -> ml = [mu | logvar | exact zeros]
    ml = jnp.dot(h.astype(jnp.bfloat16), w2_ref[...],
                 preferred_element_type=jnp.float32) + b2_ref[...]

    mu = ml[:, :out_dim]
    logvar = ml[:, out_dim:2 * out_dim]

    # reparameterize in f32: std = exp(0.5*logvar); z = exp(eps*std + mu)
    std = jnp.exp(0.5 * logvar)
    z = jnp.exp(eps_ref[...] * std + mu)

    # lane-dense, 128-aligned, unmasked writebacks.
    out_ref[:, :op2] = ml.astype(out_ref.dtype)
    if op2 > out_dim:
        z_block = jnp.concatenate(
            [z, jnp.zeros((z.shape[0], op2 - out_dim), jnp.float32)], axis=-1)
    else:
        z_block = z
    out_ref[:, op2:] = z_block.astype(out_ref.dtype)


def pack_params(params, input_dim, out_dim, weight_dtype=jnp.bfloat16):
    """One-time packing: fuse mean/var branches; pad only lane dims to 128.

    Layout:
      W1 (d_in, hp)     : [wm1 | wv1 | 0]        (hp = round_up(hm+hv, 128))
      W2 (hp,  op2)     : block-diagonal, mu cols [0:out_dim],
                          logvar cols [out_dim:2*out_dim]
                          (op2 = round_up(2*out_dim, 128))
    Padded rows/cols are exact zeros, so padded lanes never leak into outputs.
    Weights are stored in bf16 (halved DMA, native MXU path); biases stay f32.
    """
    wm1, bm1, wm2, bm2 = params["wm1"], params["bm1"], params["wm2"], params["bm2"]
    wv1, bv1, wv2, bv2 = params["wv1"], params["bv1"], params["wv2"], params["bv2"]
    hm, hv = wm1.shape[1], wv1.shape[1]

    hp = _round_up(hm + hv, LANE)
    op2 = _round_up(2 * out_dim, LANE)

    w1 = jnp.zeros((input_dim, hp), jnp.float32)
    w1 = w1.at[:, :hm].set(wm1).at[:, hm:hm + hv].set(wv1)
    b1 = jnp.zeros((1, hp), jnp.float32)
    b1 = b1.at[:, :hm].set(bm1).at[:, hm:hm + hv].set(bv1)

    w2 = jnp.zeros((hp, op2), jnp.float32)
    w2 = w2.at[:hm, :out_dim].set(wm2)
    w2 = w2.at[hm:hm + hv, out_dim:2 * out_dim].set(wv2)
    b2 = jnp.zeros((1, op2), jnp.float32)
    b2 = b2.at[:, :out_dim].set(bm2).at[:, out_dim:2 * out_dim].set(bv2)

    return dict(w1=w1.astype(weight_dtype), b1=b1,
                w2=w2.astype(weight_dtype), b2=b2)


@jax.jit
def lognormal_distr_generator(x, packed, eps):
    """Fused forward pass. Returns (z, {'mean': mu, 'logstd': logvar}).

    'logstd' holds the log-VARIANCE (matching the torch module's usage);
    std = exp(0.5 * logvar).
    """
    B, d_in = x.shape
    out_dim = eps.shape[1]
    hp = packed["w1"].shape[1]
    op2 = packed["w2"].shape[1]

    # Fixed 512-row tiles; never a single full-batch block for large B.
    # Ragged last tile (B % tb != 0) is handled by Pallas read-pad/write-mask:
    # rows are independent, so garbage rows in the padded tile are never
    # written back.
    tb = B if B <= 512 else 512
    grid = (pl.cdiv(B, tb),)

    itemsize = lambda a: a.size * a.dtype.itemsize
    cost = pl.CostEstimate(
        flops=2 * B * (d_in * hp + hp * op2),
        transcendentals=2 * B * out_dim,
        bytes_accessed=(itemsize(x) + itemsize(eps)
                        + itemsize(packed["w1"]) + itemsize(packed["b1"])
                        + itemsize(packed["w2"]) + itemsize(packed["b2"])
                        + B * 2 * op2 * 4),
    )

    kernel = functools.partial(_lognormal_fused_kernel, out_dim=out_dim, op2=op2)

    slab = pl.pallas_call(
        kernel,
        out_shape=jax.ShapeDtypeStruct((B, 2 * op2), jnp.float32),
        grid=grid,
        in_specs=[
            pl.BlockSpec((tb, d_in), lambda i: (i, 0)),   # x tile (unpadded lanes)
            pl.BlockSpec((d_in, hp), lambda i: (0, 0)),   # fused W1 (resident)
            pl.BlockSpec((1, hp), lambda i: (0, 0)),      # fused b1
            pl.BlockSpec((hp, op2), lambda i: (0, 0)),    # block-diag W2 (resident)
            pl.BlockSpec((1, op2), lambda i: (0, 0)),     # fused b2
            pl.BlockSpec((tb, out_dim), lambda i: (i, 0)),  # eps tile (unpadded)
        ],
        out_specs=pl.BlockSpec((tb, 2 * op2), lambda i: (i, 0)),
        compiler_params=pltpu.CompilerParams(dimension_semantics=("parallel",)),
        cost_estimate=cost,
    )(x, packed["w1"], packed["b1"], packed["w2"], packed["b2"], eps)

    mu = slab[:, :out_dim]
    logvar = slab[:, out_dim:2 * out_dim]
    z = slab[:, op2:op2 + out_dim]
    return z, {"mean": mu, "logstd": logvar}


def init_params(key, input_dim, mean_layers_dim, mean_output_dim, var_layers_dim):
    """Deterministic synthetic parameters (single hidden layer per branch).

    Weights are (in_features, out_features); biases (1, out_features).
    """
    assert len(mean_layers_dim) == 1 and len(var_layers_dim) == 1, \
        "this synthetic setup uses one hidden layer per branch"
    hm, hv = mean_layers_dim[0], var_layers_dim[0]
    ks = jax.random.split(key, 8)

    def linear(kw, kb, fan_in, fan_out):
        bound = 1.0 / jnp.sqrt(fan_in)
        w = jax.random.uniform(kw, (fan_in, fan_out), jnp.float32, -bound, bound)
        b = jax.random.uniform(kb, (1, fan_out), jnp.float32, -bound, bound)
        return w, b

    wm1, bm1 = linear(ks[0], ks[1], input_dim, hm)
    wm2, bm2 = linear(ks[2], ks[3], hm, mean_output_dim)
    wv1, bv1 = linear(ks[4], ks[5], input_dim, hv)
    wv2, bv2 = linear(ks[6], ks[7], hv, mean_output_dim)
    return dict(wm1=wm1, bm1=bm1, wm2=wm2, bm2=bm2,
                wv1=wv1, bv1=bv1, wv2=wv2, bv2=bv2)


if __name__ == "__main__":
    # Small shapes consistent with the module's forward: x is (batch, input_dim).
    B, input_dim, hidden, out_dim = 8, 32, 64, 16

    key = jax.random.PRNGKey(0)
    k_x, k_p, k_eps = jax.random.split(key, 3)

    x = jax.random.normal(k_x, (B, input_dim), dtype=jnp.float32)
    params = init_params(k_p, input_dim, [hidden], out_dim, [hidden])
    # TODO(synk): the torch module draws the reparameterization noise internally
    # (torch.randn); here it is passed in as `eps` for determinism/testability.
    eps = jax.random.normal(k_eps, (B, out_dim), dtype=jnp.float32)

    packed = pack_params(params, input_dim, out_dim)

    z, aux = lognormal_distr_generator(x, packed, eps)
    jax.block_until_ready((z, aux))

    # Reference in plain JAX (unfused, unpadded), with the same bf16 rounding
    # of matmul inputs as the kernel and f32 accumulation / elementwise math.
    def lin(a, w, b):
        return jnp.dot(a.astype(jnp.bfloat16), w.astype(jnp.bfloat16),
                       preferred_element_type=jnp.float32) + b

    hm_act = jnp.maximum(lin(x, params["wm1"], params["bm1"]), 0.0)
    mu_ref = lin(hm_act, params["wm2"], params["bm2"])
    hv_act = jnp.maximum(lin(x, params["wv1"], params["bv1"]), 0.0)
    lv_ref = lin(hv_act, params["wv2"], params["bv2"])
    z_ref = jnp.exp(eps * jnp.exp(0.5 * lv_ref) + mu_ref)

    assert jnp.allclose(aux["mean"], mu_ref, atol=1e-4, rtol=1e-4)
    assert jnp.allclose(aux["logstd"], lv_ref, atol=1e-4, rtol=1e-4)
    assert jnp.allclose(z, z_ref, atol=1e-3, rtol=1e-3)

    print("KERNEL_OK")
</pallas_src>

<mosaic_0001>
module attributes {stable_mosaic.version = 11 : i64} {
  func.func @_lognormal_fused_kernel(%arg0: i32, %arg1: memref<8x32xf32, #tpu.memory_space<vmem>>, %arg2: memref<32x128xbf16, #tpu.memory_space<vmem>>, %arg3: memref<1x128xf32, #tpu.memory_space<vmem>>, %arg4: memref<128x128xbf16, #tpu.memory_space<vmem>>, %arg5: memref<1x128xf32, #tpu.memory_space<vmem>>, %arg6: memref<8x16xf32, #tpu.memory_space<vmem>>, %arg7: memref<8x256xf32, #tpu.memory_space<vmem>>) attributes {dimension_semantics = [#tpu.dimension_semantics<parallel>], iteration_bounds = array<i64: 1>, scalar_prefetch = 0 : i64, scratch_operands = 0 : i64, tpu.core_type = #tpu.core_type<tc>, window_params = [{transform_indices = @transform_0, window_bounds = array<i64: 8, 32>}, {pipeline_mode = #tpu.pipeline_mode<synchronous>, transform_indices = @transform_1, window_bounds = array<i64: 32, 128>}, {pipeline_mode = #tpu.pipeline_mode<synchronous>, transform_indices = @transform_2, window_bounds = array<i64: 1, 128>}, {pipeline_mode = #tpu.pipeline_mode<synchronous>, transform_indices = @transform_3, window_bounds = array<i64: 128, 128>}, {pipeline_mode = #tpu.pipeline_mode<synchronous>, transform_indices = @transform_4, window_bounds = array<i64: 1, 128>}, {transform_indices = @transform_5, window_bounds = array<i64: 8, 16>}, {transform_indices = @transform_6, window_bounds = array<i64: 8, 256>}]} {
    %c0 = arith.constant 0 : index
    %c0_0 = arith.constant 0 : index
    %0 = vector.load %arg1[%c0, %c0_0] : memref<8x32xf32, #tpu.memory_space<vmem>>, vector<8x32xf32>
    %1 = arith.truncf %0 : vector<8x32xf32> to vector<8x32xbf16>
    %c0_1 = arith.constant 0 : index
    %c0_2 = arith.constant 0 : index
    %2 = vector.load %arg2[%c0_1, %c0_2] : memref<32x128xbf16, #tpu.memory_space<vmem>>, vector<32x128xbf16>
    %cst = arith.constant dense<0.000000e+00> : vector<8x128xf32>
    %3 = tpu.matmul %1, %2, %cst {dimension_numbers = #tpu.dot_dimension_numbers<[1], [0], [0], [1], [0, 0, 1, 1], [], []>} : vector<8x32xbf16>, vector<32x128xbf16>, vector<8x128xf32> -> vector<8x128xf32>
    %c0_3 = arith.constant 0 : index
    %c0_4 = arith.constant 0 : index
    %4 = vector.load %arg3[%c0_3, %c0_4] : memref<1x128xf32, #tpu.memory_space<vmem>>, vector<1x128xf32>
    %5 = vector.broadcast %4 : vector<1x128xf32> to vector<8x128xf32>
    %6 = arith.addf %3, %5 : vector<8x128xf32>
    %cst_5 = arith.constant 0.000000e+00 : f32
    %7 = vector.broadcast %cst_5 : f32 to vector<8x128xf32>
    %8 = arith.maximumf %6, %7 : vector<8x128xf32>
    %9 = arith.truncf %8 : vector<8x128xf32> to vector<8x128xbf16>
    %c0_6 = arith.constant 0 : index
    %c0_7 = arith.constant 0 : index
    %10 = vector.load %arg4[%c0_6, %c0_7] : memref<128x128xbf16, #tpu.memory_space<vmem>>, vector<128x128xbf16>
    %cst_8 = arith.constant dense<0.000000e+00> : vector<8x128xf32>
    %11 = tpu.matmul %9, %10, %cst_8 {dimension_numbers = #tpu.dot_dimension_numbers<[1], [0], [0], [1], [0, 0, 1, 1], [], []>} : vector<8x128xbf16>, vector<128x128xbf16>, vector<8x128xf32> -> vector<8x128xf32>
    %c0_9 = arith.constant 0 : index
    %c0_10 = arith.constant 0 : index
    %12 = vector.load %arg5[%c0_9, %c0_10] : memref<1x128xf32, #tpu.memory_space<vmem>>, vector<1x128xf32>
    %13 = vector.broadcast %12 : vector<1x128xf32> to vector<8x128xf32>
    %14 = arith.addf %11, %13 : vector<8x128xf32>
    %15 = vector.extract_strided_slice %14 {offsets = [0, 0], sizes = [8, 16], strides = [1, 1]} : vector<8x128xf32> to vector<8x16xf32>
    %16 = vector.extract_strided_slice %14 {offsets = [0, 16], sizes = [8, 16], strides = [1, 1]} : vector<8x128xf32> to vector<8x16xf32>
    %cst_11 = arith.constant 5.000000e-01 : f32
    %17 = vector.broadcast %cst_11 : f32 to vector<8x16xf32>
    %18 = arith.mulf %17, %16 : vector<8x16xf32>
    %19 = math.exp %18 : vector<8x16xf32>
    %c0_12 = arith.constant 0 : index
    %c0_13 = arith.constant 0 : index
    %20 = vector.load %arg6[%c0_12, %c0_13] : memref<8x16xf32, #tpu.memory_space<vmem>>, vector<8x16xf32>
    %21 = arith.mulf %20, %19 : vector<8x16xf32>
    %22 = arith.addf %21, %15 : vector<8x16xf32>
    %23 = math.exp %22 : vector<8x16xf32>
    %c0_14 = arith.constant 0 : index
    %c0_15 = arith.constant 0 : index
    %24 = vector.load %arg7[%c0_14, %c0_15] : memref<8x256xf32, #tpu.memory_space<vmem>>, vector<8x128xf32>
    tpu.vector_store %arg7[%c0_14, %c0_15], %14 {strides = array<i32>} : memref<8x256xf32, #tpu.memory_space<vmem>>, vector<8x128xf32>,
    %cst_16 = arith.constant 0.000000e+00 : f32
    %25 = vector.broadcast %cst_16 : f32 to vector<8x112xf32>
    %26 = tpu.concatenate %23, %25 in 1 : vector<8x16xf32>, vector<8x112xf32> -> vector<8x128xf32>
    %c0_17 = arith.constant 0 : index
    %c128 = arith.constant 128 : index
    %27 = vector.load %arg7[%c0_17, %c128] : memref<8x256xf32, #tpu.memory_space<vmem>>, vector<8x128xf32>
    tpu.vector_store %arg7[%c0_17, %c128], %26 {strides = array<i32>} : memref<8x256xf32, #tpu.memory_space<vmem>>, vector<8x128xf32>,
    return
  }
  func.func @transform_0(%arg0: i32) -> (i32, i32) {
    %c0_i32 = arith.constant 0 : i32
    %c0_i32_0 = arith.constant 0 : i32
    return %arg0, %c0_i32 : i32, i32
  }
  func.func @transform_1(%arg0: i32) -> (i32, i32) {
    %c0_i32 = arith.constant 0 : i32
    %c0_i32_0 = arith.constant 0 : i32
    %c0_i32_1 = arith.constant 0 : i32
    return %c0_i32, %c0_i32_0 : i32, i32
  }
  func.func @transform_2(%arg0: i32) -> (i32, i32) {
    %c0_i32 = arith.constant 0 : i32
    %c0_i32_0 = arith.constant 0 : i32
    %c0_i32_1 = arith.constant 0 : i32
    return %c0_i32, %c0_i32_0 : i32, i32
  }
  func.func @transform_3(%arg0: i32) -> (i32, i32) {
    %c0_i32 = arith.constant 0 : i32
    %c0_i32_0 = arith.constant 0 : i32
    %c0_i32_1 = arith.constant 0 : i32
    return %c0_i32, %c0_i32_0 : i32, i32
  }
  func.func @transform_4(%arg0: i32) -> (i32, i32) {
    %c0_i32 = arith.constant 0 : i32
    %c0_i32_0 = arith.constant 0 : i32
    %c0_i32_1 = arith.constant 0 : i32
    return %c0_i32, %c0_i32_0 : i32, i32
  }
  func.func @transform_5(%arg0: i32) -> (i32, i32) {
    %c0_i32 = arith.constant 0 : i32
    %c0_i32_0 = arith.constant 0 : i32
    return %arg0, %c0_i32 : i32, i32
  }
  func.func @transform_6(%arg0: i32) -> (i32, i32) {
    %c0_i32 = arith.constant 0 : i32
    %c0_i32_0 = arith.constant 0 : i32
    return %arg0, %c0_i32 : i32, i32
  }
}

</mosaic_0001>

<llo_original>
// kernel: lognormal_distr_generator.1
$region0: #{lognormal_distr_generator.1}
  #allocation0 [shape = 'u32[]', space=smem, size = 0x4, offset = 0x4, fixed_abs, tag = 'smem constant byte address 0x4 - core index']
  #allocation1 [shape = 'u32[144,128]{1,0:T(1,128)}', space=vmem, size = 0x12000, scoped, tag = 'internal scratch']
  %s0 = inlined_call_operand.hbm [shape: f32[8,32], index: 0, kind: input, shape index: {}]
  %s1 = inlined_call_operand.hbm [shape: bf16[32,128], index: 1, kind: input, shape index: {}]
  %s2 = inlined_call_operand.vmem [shape: f32[1,128], index: 2, kind: input, shape index: {}]
  %s3 = inlined_call_operand.hbm [shape: bf16[128,128], index: 3, kind: input, shape index: {}]
  %s4 = inlined_call_operand.vmem [shape: f32[1,128], index: 4, kind: input, shape index: {}]
  %s5 = inlined_call_operand.vmem [shape: f32[8,16], index: 5, kind: input, shape index: {}]
  %s6 = inlined_call_operand.vmem [shape: f32[8,256], index: 6, kind: output, shape index: {}]
  %s7 = sld [smem:[#allocation0]]
  $region46: #{lognormal_distr_generator.1} parent=0
    _
  %s9 = ssub.s32 1, %s7
  %s10 = scalar_select 0, %s9, %s7
  $region1: #{lognormal_distr_generator.1} parent=0
    #allocation2 [shape = 'u8[4096]{0}', space=vmem, size = 0x1000, scoped, tag = 'input window, operand 0, single buffered']
    #allocation3 [shape = 's32[1]{0}', space=sflag, size = 0x4, scoped, tag = 'scoped memory for lognormal_distr_generator.1']
    #allocation4 [shape = 'u8[8192]{0}', space=vmem, size = 0x2000, scoped, tag = 'input window, operand 1, single buffered']
    #allocation5 [shape = 's32[1]{0}', space=sflag, size = 0x4, scoped, tag = 'scoped memory for lognormal_distr_generator.1']
    #allocation6 [shape = 'u8[32768]{0}', space=vmem, size = 0x8000, scoped, tag = 'input window, operand 3, single buffered']
    %11 = vsyncpa [#allocation3], 0
    %12 = vsyncpa [#allocation5], 0
    // Predicated region
    $region2: #{lognormal_distr_generator.1} parent=1 // pred_check
      _
    $region3: #{lognormal_distr_generator.1} parent=1 // pred_check_branch
      %14 = sbr.rel (0) target = $region5
    $region4: #{lognormal_distr_generator.1} parent=1 // pred_region
      %s16 = ssub.s32 128, 128
      %17 = vsyncadd [#allocation3], %s16
      %s19 = sshll.u32 [#allocation2], 4
      %s20 = int_to_ptr.vmem [resolvable:$true] %s19
      %22 = dma.hbm_to_vmem [thread:$0]  %s0, 128, %s20, [#allocation3]
    $region5: #{lognormal_distr_generator.1} parent=1 // pred_fallthru
      _
    // Predicated region
    $region6: #{lognormal_distr_generator.1} parent=1 // pred_check
      _
    $region7: #{lognormal_distr_generator.1} parent=1 // pred_check_branch
      %24 = sbr.rel (0) target = $region9
    $region8: #{lognormal_distr_generator.1} parent=1 // pred_region
      %s26 = ssub.s32 256, 256
      %27 = vsyncadd [#allocation5], %s26
      %s28 = sshll.u32 [#allocation4], 4
      %s29 = int_to_ptr.vmem [resolvable:$true] %s28
      %34 = dma.hbm_to_vmem [thread:$0]  %s1, 256, %s29, [#allocation5], 64, 64, 4
    $region9: #{lognormal_distr_generator.1} parent=1 // pred_fallthru
      _
    // Predicated region
    $region10: #{lognormal_distr_generator.1} parent=1 // pred_check
      _
    $region11: #{lognormal_distr_generator.1} parent=1 // pred_check_branch
      %36 = sbr.rel (0) target = $region13
    $region12: #{lognormal_distr_generator.1} parent=1 // pred_region
      _
    $region13: #{lognormal_distr_generator.1} parent=1 // pred_fallthru
      _
    // Predicated region
    $region14: #{lognormal_distr_generator.1} parent=1 // pred_check
      _
    $region15: #{lognormal_distr_generator.1} parent=1 // pred_check_branch
      %38 = sbr.rel (0) target = $region17
    $region16: #{lognormal_distr_generator.1} parent=1 // pred_region
      %s40 = ssub.s32 1024, 1024
      %41 = vsyncadd [#allocation5], %s40
      %s42 = sshll.u32 [#allocation6], 4
      %s43 = int_to_ptr.vmem [resolvable:$true] %s42
      %48 = dma.hbm_to_vmem [thread:$0]  %s3, 1024, %s43, [#allocation5], 64, 64, 4
    $region17: #{lognormal_distr_generator.1} parent=1 // pred_fallthru
      _
    // Predicated region
    $region18: #{lognormal_distr_generator.1} parent=1 // pred_check
      _
    $region19: #{lognormal_distr_generator.1} parent=1 // pred_check_branch
      %50 = sbr.rel (0) target = $region21
    $region20: #{lognormal_distr_generator.1} parent=1 // pred_region
      _
    $region21: #{lognormal_distr_generator.1} parent=1 // pred_fallthru
      _
    // Predicated region
    $region22: #{lognormal_distr_generator.1} parent=1 // pred_check
      _
    $region23: #{lognormal_distr_generator.1} parent=1 // pred_check_branch
      %52 = sbr.rel (0) target = $region25
    $region24: #{lognormal_distr_generator.1} parent=1 // pred_region
      _
    $region25: #{lognormal_distr_generator.1} parent=1 // pred_fallthru
      _
    // Predicated region
    $region26: #{lognormal_distr_generator.1} parent=1 // pred_check
      _
    $region27: #{lognormal_distr_generator.1} parent=1 // pred_check_branch
      %54 = sbr.rel (0) target = $region29
    $region28: #{lognormal_distr_generator.1} parent=1 // pred_region
      %55 = dma.done [#allocation3], 128
    $region29: #{lognormal_distr_generator.1} parent=1 // pred_fallthru
      _
    // Predicated region
    $region30: #{lognormal_distr_generator.1} parent=1 // pred_check
      _
    $region31: #{lognormal_distr_generator.1} parent=1 // pred_check_branch
      %57 = sbr.rel (0) target = $region33
    $region32: #{lognormal_distr_generator.1} parent=1 // pred_region
      %58 = dma.done [#allocation5], 256
    $region33: #{lognormal_distr_generator.1} parent=1 // pred_fallthru
      _
    // Predicated region
    $region34: #{lognormal_distr_generator.1} parent=1 // pred_check
      _
    $region35: #{lognormal_distr_generator.1} parent=1 // pred_check_branch
      %60 = sbr.rel (0) target = $region37
    $region36: #{lognormal_distr_generator.1} parent=1 // pred_region
      %61 = dma.done [#allocation5], 1024
    $region37: #{lognormal_distr_generator.1} parent=1 // pred_fallthru
      _
    %v63 = vld [vmem:[#allocation2] sm:$0xff]
    %v64 = vpack.c.bf16 %v63, %v63
    %v65 = vld [vmem:[#allocation4] sm:$0xf]
    %v66 = vld [vmem:[#allocation4 + $0x4] sm:$0xf]
    %v67 = vld [vmem:[#allocation4 + $0x8] sm:$0xf]
    %v68 = vld [vmem:[#allocation4 + $0xc] sm:$0xf]
    %v69 = vld [vmem:[%s2] sm:$0x1]
    %v71 = vlaneseq
    %v72 = vshrl.u32 %v71, 7
    %v73 = vsub.s32 0, %v72
    %v74 = vrot.slane %v69, %v73
    %v80 = vunpack.c.l.b16 %v65
    %v81 = vunpack.c.l.b16 %v66
    %v82 = vunpack.c.l.b16 %v67
    %v83 = vunpack.c.l.b16 %v68
    %v84 = vpack.c.b16 %v81, %v80
    %v85 = vpack.c.b16 %v83, %v82
    %vm88 = vcmask 261120
    %v90 = vsel %vm88, %v64, 0
    %92 = vmatprep.subr.bf16.mxu0 0
    %93 = vmatpush1.bf16.msra.mxu0 %v84
    %94 = vmatprep.subr.bf16.mxu0 0
    %95 = vmatpush1.bf16.msra.mxu0 %v85
    %96 = vmatprep.subr.bf16.mxu0 0
    %97 = vmatpush1.bf16.msra.mxu0 0
    %98 = vmatprep.subr.bf16.mxu0 0
    %99 = vmatpush1.bf16.msra.mxu0 0
    %100 = vmatprep.subr.bf16.mxu0 0
    %101 = vmatpush1.bf16.msra.mxu0 0
    %102 = vmatprep.subr.bf16.mxu0 0
    %103 = vmatpush1.bf16.msra.mxu0 0
    %104 = vmatprep.subr.bf16.mxu0 0
    %105 = vmatpush1.bf16.msra.mxu0 0
    %106 = vmatprep.subr.bf16.mxu0 0
    %107 = vmatpush1.bf16.msra.mxu0 0
    %108 = vmatprep.subr.bf16.mxu0 0
    %109 = vmatpush1.bf16.msra.mxu0 0
    %110 = vmatprep.subr.bf16.mxu0 0
    %111 = vmatpush1.bf16.msra.mxu0 0
    %112 = vmatprep.subr.bf16.mxu0 0
    %113 = vmatpush1.bf16.msra.mxu0 0
    %114 = vmatprep.subr.bf16.mxu0 0
    %115 = vmatpush1.bf16.msra.mxu0 0
    %116 = vmatprep.subr.bf16.mxu0 0
    %117 = vmatpush1.bf16.msra.mxu0 0
    %118 = vmatprep.subr.bf16.mxu0 0
    %119 = vmatpush1.bf16.msra.mxu0 0
    %120 = vmatprep.subr.bf16.mxu0 0
    %121 = vmatpush1.bf16.msra.mxu0 0
    %122 = vmatprep.subr.bf16.mxu0 0
    %123 = vmatpush1.bf16.msra.mxu0 0
    %124 = vmatprep.mubr.bf16.mxu0 0
    %125 = vmatmul.mubr.bf16.gmra.mrb[0].mxu0 %v90
    %v126 = vpop.f32.mrb[0].mxu0
    %v127 = vadd.f32 %v74, %v126
    %v128 = vpop.f32.mrb[0].mxu0
    %v129 = vpop.f32.mrb[0].mxu0
    %v130 = vpop.f32.mrb[0].mxu0
    %131 = vdwg.mxu0
    %v132 = vmax.f32 %v127, 0.0
    %v133 = vpack.c.bf16 %v132, %v132
    %v134 = vld [vmem:[#allocation6] sm:$0xf]
    %v135 = vld [vmem:[#allocation6 + $0x4] sm:$0xf]
    %v136 = vld [vmem:[#allocation6 + $0x8] sm:$0xf]
    %v137 = vld [vmem:[#allocation6 + $0xc] sm:$0xf]
    %v138 = vld [vmem:[#allocation6 + $0x10] sm:$0xf]
    %v139 = vld [vmem:[#allocation6 + $0x14] sm:$0xf]
    %v140 = vld [vmem:[#allocation6 + $0x18] sm:$0xf]
    %v141 = vld [vmem:[#allocation6 + $0x1c] sm:$0xf]
    %v142 = vld [vmem:[#allocation6 + $0x20] sm:$0xf]
    %v143 = vld [vmem:[#allocation6 + $0x24] sm:$0xf]
    %v144 = vld [vmem:[#allocation6 + $0x28] sm:$0xf]
    %v145 = vld [vmem:[#allocation6 + $0x2c] sm:$0xf]
    %v146 = vld [vmem:[#allocation6 + $0x30] sm:$0xf]
    %v147 = vld [vmem:[#allocation6 + $0x34] sm:$0xf]
    %v148 = vld [vmem:[#allocation6 + $0x38] sm:$0xf]
    %v149 = vld [vmem:[#allocation6 + $0x3c] sm:$0xf]
    %v150 = vld [vmem:[%s4] sm:$0x1]
    %v152 = vlaneseq
    %v153 = vshrl.u32 %v152, 7
    %v154 = vsub.s32 0, %v153
    %v155 = vrot.slane %v150, %v154
    %v173 = vunpack.c.l.b16 %v134
    %v174 = vunpack.c.l.b16 %v135
    %v175 = vunpack.c.l.b16 %v136
    %v176 = vunpack.c.l.b16 %v137
    %v177 = vunpack.c.l.b16 %v138
    %v178 = vunpack.c.l.b16 %v139
    %v179 = vunpack.c.l.b16 %v140
    %v180 = vunpack.c.l.b16 %v141
    %v181 = vunpack.c.l.b16 %v142
    %v182 = vunpack.c.l.b16 %v143
    %v183 = vunpack.c.l.b16 %v144
    %v184 = vunpack.c.l.b16 %v145
    %v185 = vunpack.c.l.b16 %v146
    %v186 = vunpack.c.l.b16 %v147
    %v187 = vunpack.c.l.b16 %v148
    %v188 = vunpack.c.l.b16 %v149
    %v189 = vpack.c.b16 %v174, %v173
    %v190 = vpack.c.b16 %v176, %v175
    %v191 = vpack.c.b16 %v178, %v177
    %v192 = vpack.c.b16 %v180, %v179
    %v193 = vpack.c.b16 %v182, %v181
    %v194 = vpack.c.b16 %v184, %v183
    %v195 = vpack.c.b16 %v186, %v185
    %v196 = vpack.c.b16 %v188, %v187
    %205 = vmatprep.subr.bf16.mxu0 0
    %206 = vmatpush1.bf16.msra.mxu0 %v189
    %207 = vmatprep.subr.bf16.mxu0 0
    %208 = vmatpush1.bf16.msra.mxu0 %v190
    %209 = vmatprep.subr.bf16.mxu0 0
    %210 = vmatpush1.bf16.msra.mxu0 %v191
    %211 = vmatprep.subr.bf16.mxu0 0
    %212 = vmatpush1.bf16.msra.mxu0 %v192
    %213 = vmatprep.subr.bf16.mxu0 0
    %214 = vmatpush1.bf16.msra.mxu0 %v193
    %215 = vmatprep.subr.bf16.mxu0 0
    %216 = vmatpush1.bf16.msra.mxu0 %v194
    %217 = vmatprep.subr.bf16.mxu0 0
    %218 = vmatpush1.bf16.msra.mxu0 %v195
    %219 = vmatprep.subr.bf16.mxu0 0
    %220 = vmatpush1.bf16.msra.mxu0 %v196
    %221 = vmatprep.subr.bf16.mxu0 0
    %222 = vmatpush1.bf16.msra.mxu0 0
    %223 = vmatprep.subr.bf16.mxu0 0
    %224 = vmatpush1.bf16.msra.mxu0 0
    %225 = vmatprep.subr.bf16.mxu0 0
    %226 = vmatpush1.bf16.msra.mxu0 0
    %227 = vmatprep.subr.bf16.mxu0 0
    %228 = vmatpush1.bf16.msra.mxu0 0
    %229 = vmatprep.subr.bf16.mxu0 0
    %230 = vmatpush1.bf16.msra.mxu0 0
    %231 = vmatprep.subr.bf16.mxu0 0
    %232 = vmatpush1.bf16.msra.mxu0 0
    %233 = vmatprep.subr.bf16.mxu0 0
    %234 = vmatpush1.bf16.msra.mxu0 0
    %235 = vmatprep.subr.bf16.mxu0 0
    %236 = vmatpush1.bf16.msra.mxu0 0
    %237 = vmatprep.mubr.bf16.mxu0 0
    %238 = vmatmul.mubr.bf16.gmra.mrb[0].mxu0 %v133
    %v239 = vpop.f32.mrb[0].mxu0
    %v240 = vadd.f32 %v155, %v239
    %v241 = vpop.f32.mrb[0].mxu0
    %v242 = vpop.f32.mrb[0].mxu0
    %v243 = vpop.f32.mrb[0].mxu0
    %244 = vdwg.mxu0
    %v245 = vmul.f32 %v240, 0.5
    %v246 = vmul.f32 %v245, 1.442695
    %v247 = vpow.pop %v246
    %v248 = vld [vmem:[%s5] sm:$0xff]
    %250 = vrot.lane.b32.xlu0 %v247, 112
    %v251 = vpop.permute.xlu0 %250
    %v253 = vmul.f32 %v248, %v251
    %v254 = vadd.f32 %v253, %v240
    %v255 = vmul.f32 %v254, 1.442695
    %v256 = vpow.pop %v255
    %257 = vst [vmem:[%s6] sm:$0xff] %v240
    %vm258 = vcmask 130048
    %v259 = vsel %vm258, %v256, 0.0
    %260 = vst [vmem:[%s6 + $0x8] sm:$0xff] %v259
    // Predicated region
    $region38: #{lognormal_distr_generator.1} parent=1 // pred_check
      _
    $region39: #{lognormal_distr_generator.1} parent=1 // pred_check_branch
      %262 = sbr.rel (0) target = $region41
    $region40: #{lognormal_distr_generator.1} parent=1 // pred_region
      _
    $region41: #{lognormal_distr_generator.1} parent=1 // pred_fallthru
      _
    // Predicated region
    $region42: #{lognormal_distr_generator.1} parent=1 // pred_check
      _
    $region43: #{lognormal_distr_generator.1} parent=1 // pred_check_branch
      %264 = sbr.rel (0) target = $region45
    $region44: #{lognormal_distr_generator.1} parent=1 // pred_region
      _
    $region45: #{lognormal_distr_generator.1} parent=1 // pred_fallthru
      _
    %265 = vsyncpa [#allocation3], 1
    %266 = vsyncpa [#allocation5], 1

</llo_original>
